<compile_context>
chip_gen: v6e
topology: v6e:2x2x1
jax: 0.10.0
libtpu: 0.0.40
codegen_flags: <defaults>
</compile_context>

<pallas_src>
import jax
import jax.numpy as jnp
from jax.experimental import pallas as pl
from jax.experimental.pallas import tpu as pltpu


def _mlp_kernel(x_ref, w1_ref, b1_ref, w2_ref, b2_ref, o_ref):
    # Layer 1: K=1 contraction -> VPU broadcast multiply-add.
    #   x: [tn, 1], w1_row/b1_row: [1, H]  ->  a2: [tn, H]
    x = x_ref[...].astype(jnp.float32)
    a2 = jnp.maximum(x * w1_ref[...] + b1_ref[...], 0.0)
    # Layer 2: out=1 contraction -> elementwise multiply + lane reduction (XLU).
    #   w2_row: [1, H], b2_row: [1, 1]  ->  z3: [tn, 1]
    z3 = jnp.sum(a2 * w2_ref[...], axis=-1, keepdims=True) + b2_ref[...]
    o_ref[...] = z3.astype(o_ref.dtype)


def prepare_params(w1, b1, w2, b2):
    """One-time layout prep (keep OUT of the per-forward hot path).

    Torch layout in:  w1 [hidden, in=1], b1 [hidden], w2 [out=1, hidden], b2 [out=1]
    Kernel layout out: w1_row [1, hidden], b1_row [1, hidden],
                       w2_row [1, hidden], b2_row [1, 1]
    """
    hidden = w1.shape[0]
    out = w2.shape[0]
    assert w1.shape[1] == 1 and out == 1, "kernel is specialized for in=1, out=1 (module spec)"
    w1_row = jnp.transpose(w1).reshape(1, hidden)
    b1_row = b1.reshape(1, hidden)
    w2_row = w2.reshape(1, hidden)
    b2_row = b2.reshape(1, out)
    return w1_row, b1_row, w2_row, b2_row


def net_forward(x, params, *, tile_n=512):
    """x: [N, 1] -> [N, 1]. params from prepare_params()."""
    w1_row, b1_row, w2_row, b2_row = params
    n = x.shape[0]
    hidden = w1_row.shape[1]
    out = b2_row.shape[1]
    out_shape = jax.ShapeDtypeStruct((n, out), x.dtype)

    if n >= tile_n and n % tile_n == 0:
        # Large batch: tile over N, double-buffered DMA, both TCs on v7x.
        bcast = lambda i: (0, 0)
        return pl.pallas_call(
            _mlp_kernel,
            out_shape=out_shape,
            grid=(n // tile_n,),
            in_specs=[
                pl.BlockSpec((tile_n, 1), lambda i: (i, 0)),
                pl.BlockSpec((1, hidden), bcast),
                pl.BlockSpec((1, hidden), bcast),
                pl.BlockSpec((1, hidden), bcast),
                pl.BlockSpec((1, out), bcast),
            ],
            out_specs=pl.BlockSpec((tile_n, out), lambda i: (i, 0)),
            compiler_params=pltpu.CompilerParams(
                dimension_semantics=("parallel",)),
        )(x, w1_row, b1_row, w2_row, b2_row)

    # Tiny batch (module's N=30): whole arrays resident in VMEM, one invocation.
    vmem = pl.BlockSpec(memory_space=pltpu.MemorySpace.VMEM)
    return pl.pallas_call(
        _mlp_kernel,
        out_shape=out_shape,
        in_specs=[vmem] * 5,
        out_specs=vmem,
    )(x, w1_row, b1_row, w2_row, b2_row)


def _torch_linear_init(key, out_features, in_features):
    """Deterministic init mimicking nn.Linear's U(-1/sqrt(fan_in), 1/sqrt(fan_in))."""
    kw, kb = jax.random.split(key)
    bound = 1.0 / (in_features ** 0.5)
    w = jax.random.uniform(kw, (out_features, in_features),
                           minval=-bound, maxval=bound, dtype=jnp.float32)
    b = jax.random.uniform(kb, (out_features,),
                           minval=-bound, maxval=bound, dtype=jnp.float32)
    return w, b


if __name__ == "__main__":
    point_num = 30
    input_num, hidden_num, output_num = 1, 32, 1

    # Same input data as the PyTorch script: arange(0, 30).view(30, 1)
    x = jnp.arange(0, point_num, 1, dtype=jnp.float32).reshape(point_num, input_num)

    key = jax.random.PRNGKey(0)
    k1, k2 = jax.random.split(key)
    w1, b1 = _torch_linear_init(k1, hidden_num, input_num)   # input_hidden
    w2, b2 = _torch_linear_init(k2, output_num, hidden_num)  # hidden_output

    # Layout prep done ONCE, outside the forward path.
    params = prepare_params(w1, b1, w2, b2)

    def ref_fn(xx):
        return jnp.maximum(xx @ w1.T + b1, 0.0) @ w2.T + b2

    # 1) Module-sized batch (N=30): whole-array VMEM path.
    y = net_forward(x, params)
    jax.block_until_ready(y)
    assert y.shape == (point_num, output_num)
    assert jnp.allclose(y, ref_fn(x), atol=1e-5, rtol=1e-5)

    # 2) Larger batch exercises the batch-tiled "parallel" grid path.
    x_big = jnp.linspace(-4.0, 4.0, 1024, dtype=jnp.float32).reshape(1024, 1)
    y_big = net_forward(x_big, params, tile_n=256)
    jax.block_until_ready(y_big)
    assert jnp.allclose(y_big, ref_fn(x_big), atol=1e-5, rtol=1e-5)

    print("KERNEL_OK")
</pallas_src>

<mosaic_0001>
module attributes {stable_mosaic.version = 11 : i64} {
  func.func @_mlp_kernel(%arg0: memref<30x1xf32, #tpu.memory_space<vmem>>, %arg1: memref<1x32xf32, #tpu.memory_space<vmem>>, %arg2: memref<1x32xf32, #tpu.memory_space<vmem>>, %arg3: memref<1x32xf32, #tpu.memory_space<vmem>>, %arg4: memref<1x1xf32, #tpu.memory_space<vmem>>, %arg5: memref<30x1xf32, #tpu.memory_space<vmem>>) attributes {dimension_semantics = [], scalar_prefetch = 0 : i64, scratch_operands = 0 : i64, tpu.core_type = #tpu.core_type<tc>} {
    %c0 = arith.constant 0 : index
    %c0_0 = arith.constant 0 : index
    %0 = vector.load %arg0[%c0, %c0_0] : memref<30x1xf32, #tpu.memory_space<vmem>>, vector<30x1xf32>
    %c0_1 = arith.constant 0 : index
    %c0_2 = arith.constant 0 : index
    %1 = vector.load %arg1[%c0_1, %c0_2] : memref<1x32xf32, #tpu.memory_space<vmem>>, vector<1x32xf32>
    %2 = vector.broadcast %0 : vector<30x1xf32> to vector<30x32xf32>
    %3 = vector.broadcast %1 : vector<1x32xf32> to vector<30x32xf32>
    %4 = arith.mulf %2, %3 : vector<30x32xf32>
    %c0_3 = arith.constant 0 : index
    %c0_4 = arith.constant 0 : index
    %5 = vector.load %arg2[%c0_3, %c0_4] : memref<1x32xf32, #tpu.memory_space<vmem>>, vector<1x32xf32>
    %6 = vector.broadcast %5 : vector<1x32xf32> to vector<30x32xf32>
    %7 = arith.addf %4, %6 : vector<30x32xf32>
    %cst = arith.constant 0.000000e+00 : f32
    %8 = vector.broadcast %cst : f32 to vector<30x32xf32>
    %9 = arith.maximumf %7, %8 : vector<30x32xf32>
    %c0_5 = arith.constant 0 : index
    %c0_6 = arith.constant 0 : index
    %10 = vector.load %arg3[%c0_5, %c0_6] : memref<1x32xf32, #tpu.memory_space<vmem>>, vector<1x32xf32>
    %11 = vector.broadcast %10 : vector<1x32xf32> to vector<30x32xf32>
    %12 = arith.mulf %9, %11 : vector<30x32xf32>
    %cst_7 = arith.constant dense<0.000000e+00> : vector<30xf32>
    %13 = vector.multi_reduction <add>, %12, %cst_7 [1] : vector<30x32xf32> to vector<30xf32>
    %14 = vector.shape_cast %13 : vector<30xf32> to vector<30x1xf32>
    %c0_8 = arith.constant 0 : index
    %c0_9 = arith.constant 0 : index
    %15 = vector.load %arg4[%c0_8, %c0_9] : memref<1x1xf32, #tpu.memory_space<vmem>>, vector<1x1xf32>
    %16 = vector.broadcast %15 : vector<1x1xf32> to vector<30x1xf32>
    %17 = arith.addf %14, %16 : vector<30x1xf32>
    %c0_10 = arith.constant 0 : index
    %c0_11 = arith.constant 0 : index
    %18 = vector.load %arg5[%c0_10, %c0_11] : memref<30x1xf32, #tpu.memory_space<vmem>>, vector<30x1xf32>
    tpu.vector_store %arg5[%c0_10, %c0_11], %17 {strides = array<i32>} : memref<30x1xf32, #tpu.memory_space<vmem>>, vector<30x1xf32>,
    return
  }
}

</mosaic_0001>

<llo_original>
// kernel: tpu_custom_call.1
$region0: #{tpu_custom_call.1}
  #allocation0 [shape = 'u32[]', space=smem, size = 0x4, offset = 0x4, fixed_abs, tag = 'smem constant byte address 0x4 - core index']
  #allocation1 [shape = 'u32[144,128]{1,0:T(1,128)}', space=vmem, size = 0x12000, scoped, tag = 'internal scratch']
  #allocation2 [shape = 'f32[1,1]{1,0:T(1,128)S(1)}', space=vmem, size = 0x200, scoped, tag = 'scoped memory for tpu_custom_call.1']
  %s0 = inlined_call_operand.vmem [shape: f32[30,1], index: 0, kind: input, shape index: {}]
  %s1 = inlined_call_operand.vmem [shape: f32[1,32], index: 1, kind: input, shape index: {}]
  %s2 = inlined_call_operand.vmem [shape: f32[1,32], index: 2, kind: input, shape index: {}]
  %s3 = inlined_call_operand.vmem [shape: f32[1,32], index: 3, kind: input, shape index: {}]
  %s4 = inlined_call_operand.<no memory space> [shape: f32[1,1], index: 4, kind: input, shape index: {}]
  %s5 = inlined_call_operand.vmem [shape: f32[30,1], index: 5, kind: output, shape index: {}]
  %s6 = sld [smem:[#allocation0]]
  $region30: #{tpu_custom_call.1} parent=0
    _
  %s8 = ssub.s32 1, %s6
  %s9 = scalar_select 0, %s8, %s6
  %v10 = vstv %s4
  %11 = vst [vmem:[#allocation2] sm:$0x1] %v10
  // Predicated region
  $region2: #{tpu_custom_call.1} parent=0 // pred_check
    _
  $region3: #{tpu_custom_call.1} parent=0 // pred_check_branch
    %13 = sbr.rel (0) target = $region5
  $region4: #{tpu_custom_call.1} parent=0 // pred_region
    _
  $region5: #{tpu_custom_call.1} parent=0 // pred_fallthru
    _
  // Predicated region
  $region6: #{tpu_custom_call.1} parent=0 // pred_check
    _
  $region7: #{tpu_custom_call.1} parent=0 // pred_check_branch
    %15 = sbr.rel (0) target = $region9
  $region8: #{tpu_custom_call.1} parent=0 // pred_region
    _
  $region9: #{tpu_custom_call.1} parent=0 // pred_fallthru
    _
  // Predicated region
  $region10: #{tpu_custom_call.1} parent=0 // pred_check
    _
  $region11: #{tpu_custom_call.1} parent=0 // pred_check_branch
    %17 = sbr.rel (0) target = $region13
  $region12: #{tpu_custom_call.1} parent=0 // pred_region
    _
  $region13: #{tpu_custom_call.1} parent=0 // pred_fallthru
    _
  // Predicated region
  $region14: #{tpu_custom_call.1} parent=0 // pred_check
    _
  $region15: #{tpu_custom_call.1} parent=0 // pred_check_branch
    %19 = sbr.rel (0) target = $region17
  $region16: #{tpu_custom_call.1} parent=0 // pred_region
    _
  $region17: #{tpu_custom_call.1} parent=0 // pred_fallthru
    _
  // Predicated region
  $region18: #{tpu_custom_call.1} parent=0 // pred_check
    _
  $region19: #{tpu_custom_call.1} parent=0 // pred_check_branch
    %21 = sbr.rel (0) target = $region21
  $region20: #{tpu_custom_call.1} parent=0 // pred_region
    _
  $region21: #{tpu_custom_call.1} parent=0 // pred_fallthru
    _
  %v22 = vld [vmem:[%s0] sm:$0xff]
  %v23 = vld [vmem:[%s0 + $0x8] sm:$0xff]
  %v24 = vld [vmem:[%s0 + $0x10] sm:$0xff]
  %v25 = vld [vmem:[%s0 + $0x18] sm:$0x3f]
  %v26 = vld [vmem:[%s1] sm:$0x1]
  %28 = vset.pattern.permute.xlu0 0
  %29 = vperm.xlu0 %28, %v22
  %v30 = vpop.permute.xlu0 %29
  %33 = vset.pattern.permute.xlu0 0
  %34 = vperm.xlu0 %33, %v23
  %v35 = vpop.permute.xlu0 %34
  %38 = vset.pattern.permute.xlu0 0
  %39 = vperm.xlu0 %38, %v24
  %v40 = vpop.permute.xlu0 %39
  %43 = vset.pattern.permute.xlu0 0
  %44 = vperm.xlu0 %43, %v25
  %v45 = vpop.permute.xlu0 %44
  %v48 = vlaneseq
  %v49 = vshrl.u32 %v48, 7
  %v50 = vsub.s32 0, %v49
  %v51 = vrot.slane %v26, %v50
  %v53 = vmul.f32 %v30, %v51
  %v54 = vmul.f32 %v35, %v51
  %v55 = vmul.f32 %v40, %v51
  %v56 = vmul.f32 %v45, %v51
  %v57 = vld [vmem:[%s2] sm:$0x1]
  %v59 = vlaneseq
  %v60 = vshrl.u32 %v59, 7
  %v61 = vsub.s32 0, %v60
  %v62 = vrot.slane %v57, %v61
  %v64 = vadd.f32 %v53, %v62
  %v65 = vadd.f32 %v54, %v62
  %v66 = vadd.f32 %v55, %v62
  %v67 = vadd.f32 %v56, %v62
  %v68 = vmax.f32 %v64, 0.0
  %v69 = vmax.f32 %v65, 0.0
  %v70 = vmax.f32 %v66, 0.0
  %v71 = vmax.f32 %v67, 0.0
  %v72 = vld [vmem:[%s3] sm:$0x1]
  %v74 = vlaneseq
  %v75 = vshrl.u32 %v74, 7
  %v76 = vsub.s32 0, %v75
  %v77 = vrot.slane %v72, %v76
  %v79 = vmul.f32 %v68, %v77
  %v80 = vmul.f32 %v69, %v77
  %v81 = vmul.f32 %v70, %v77
  %v82 = vmul.f32 %v71, %v77
  %vm83 = vcmask 261120
  %v84 = vsel %vm83, %v79, 0.0
  %85 = vadd.xlane.f32.xlu0 %v84
  %v86 = vpop.xlane.xlu0 %85
  %v87 = vsel %vm83, %v80, 0.0
  %88 = vadd.xlane.f32.xlu0 %v87
  %v89 = vpop.xlane.xlu0 %88
  %v90 = vsel %vm83, %v81, 0.0
  %91 = vadd.xlane.f32.xlu0 %v90
  %v92 = vpop.xlane.xlu0 %91
  %vm93 = vcmask 259072
  %v94 = vsel %vm93, %v82, 0.0
  %95 = vadd.xlane.f32.xlu0 %v94
  %v96 = vpop.xlane.xlu0 %95
  %v97 = vld [vmem:[#allocation2] sm:$0x1]
  %v99 = vlaneseq
  %v100 = vshrl.u32 %v99, 7
  %v101 = vsub.s32 0, %v100
  %v102 = vrot.slane %v97, %v101
  %v104 = vadd.f32 %v86, %v102
  %v105 = vadd.f32 %v89, %v102
  %v106 = vadd.f32 %v92, %v102
  %v107 = vadd.f32 %v96, %v102
  %vm108 = vcmask 7168
  %109 = vst.msk [vmem:[%s5] sm:$0xff] %vm108, %v104
  %110 = vst.msk [vmem:[%s5 + $0x8] sm:$0xff] %vm108, %v105
  %111 = vst.msk [vmem:[%s5 + $0x10] sm:$0xff] %vm108, %v106
  %vm112 = vcmask 5120
  %113 = vst.msk [vmem:[%s5 + $0x18] sm:$0x3f] %vm112, %v107
  // Predicated region
  $region22: #{tpu_custom_call.1} parent=0 // pred_check
    _
  $region23: #{tpu_custom_call.1} parent=0 // pred_check_branch
    %115 = sbr.rel (0) target = $region25
  $region24: #{tpu_custom_call.1} parent=0 // pred_region
    _
  $region25: #{tpu_custom_call.1} parent=0 // pred_fallthru
    _
  // Predicated region
  $region26: #{tpu_custom_call.1} parent=0 // pred_check
    _
  $region27: #{tpu_custom_call.1} parent=0 // pred_check_branch
    %117 = sbr.rel (0) target = $region29
  $region28: #{tpu_custom_call.1} parent=0 // pred_region
    _
  $region29: #{tpu_custom_call.1} parent=0 // pred_fallthru
    _

</llo_original>
